<compile_context>
chip_gen: v7x
topology: tpu7x:2x2x1
jax: 0.10.0
libtpu: 0.0.40
codegen_flags: <defaults>
</compile_context>

<pallas_src>
import jax
import jax.numpy as jnp
from jax.experimental import pallas as pl
from jax.experimental.pallas import tpu as pltpu


def _round_up(x, m):
    return (x + m - 1) // m * m


def _round_down(x, m):
    return (x // m) * m


# ---------------------------------------------------------------------------
# Kernel body
# ---------------------------------------------------------------------------
def linear_kernel(x_ref, wt_ref, b_ref, o_ref):
    # x_ref : (TB, D)      VMEM  batch tile (pipelined over the grid)
    # wt_ref: (D, C_pad)   VMEM  resident, already in compute dtype
    # b_ref : (1, C_pad)   VMEM  resident, f32
    # o_ref : (TB, C_pad)  VMEM  lane-dense output tile
    x = x_ref[...]
    w = wt_ref[...]
    if x.dtype != w.dtype:          # trace-time branch; no-op when x is pre-cast
        x = x.astype(w.dtype)
    acc = jnp.dot(x, w, preferred_element_type=jnp.float32)
    o_ref[...] = (acc + b_ref[...]).astype(o_ref.dtype)


# ---------------------------------------------------------------------------
# One-time (static) parameter repack
# ---------------------------------------------------------------------------
def prepare_lr_params(weight, bias, *, compute_dtype=jnp.float32):
    """Repack nn.Linear params for the kernel (done once; params are static).

    weight: (C, D) PyTorch nn.Linear layout  ->  wt_pad: (D, C_pad) compute_dtype
    bias:   (C,)                             ->  b_pad : (1, C_pad) float32
    C_pad = round_up(C, 128) so the kernel output is lane-dense.
    """
    C, D = weight.shape
    C_pad = _round_up(C, 128)
    wt = jnp.asarray(weight, jnp.float32).T                        # (D, C)
    wt_pad = jnp.zeros((D, C_pad), jnp.float32).at[:, :C].set(wt)
    wt_pad = wt_pad.astype(compute_dtype)                          # pre-cast once
    b_pad = jnp.zeros((1, C_pad), jnp.float32).at[0, :C].set(
        jnp.asarray(bias, jnp.float32))
    return wt_pad, b_pad, C


# ---------------------------------------------------------------------------
# Tile-size selection (VMEM-budget driven, generation-safe)
# ---------------------------------------------------------------------------
def _pick_batch_tile(B, D, C_pad, x_bytes, out_bytes, w_bytes,
                     vmem_budget_bytes=24 << 20, tb_ceiling=2048):
    """Pick batch tile TB (multiple of 8) and padded batch B_pad = k * TB."""
    B8 = _round_up(max(B, 1), 8)

    # Resident (single-buffered) weight + bias; pipelined x (2x) + out (2x).
    resident = D * C_pad * w_bytes + C_pad * 4
    per_row = 2 * D * x_bytes + 2 * C_pad * out_bytes
    tb_budget = max((vmem_budget_bytes - resident) // max(per_row, 1), 8)

    tb = min(tb_ceiling, tb_budget, B8)
    # Ensure >= 2 grid tiles when possible so the "parallel" batch axis can be
    # sharded across v7x's two TensorCores (no-op on single-core v5e/v6e).
    if B8 >= 16:
        tb = min(tb, _round_down(B8 // 2, 8))
    tb = max(_round_down(tb, 8), 8)

    b_pad = _round_up(B, tb)
    return tb, b_pad


# ---------------------------------------------------------------------------
# pallas_call builder (+ single-buffer probe fallback)
# ---------------------------------------------------------------------------
def _build_call(B_pad, D, C_pad, TB, out_dtype, flops, bytes_accessed,
                single_buffer_resident):
    if single_buffer_resident:
        w_spec = pl.BlockSpec((D, C_pad), lambda i: (0, 0),
                              pipeline_mode=pl.Buffered(1))
        b_spec = pl.BlockSpec((1, C_pad), lambda i: (0, 0),
                              pipeline_mode=pl.Buffered(1))
    else:
        w_spec = pl.BlockSpec((D, C_pad), lambda i: (0, 0))
        b_spec = pl.BlockSpec((1, C_pad), lambda i: (0, 0))

    return pl.pallas_call(
        linear_kernel,
        out_shape=jax.ShapeDtypeStruct((B_pad, C_pad), out_dtype),
        grid_spec=pltpu.PrefetchScalarGridSpec(
            num_scalar_prefetch=0,
            grid=(B_pad // TB,),
            in_specs=[
                pl.BlockSpec((TB, D), lambda i: (i, 0)),   # batch tile
                w_spec,                                    # resident W
                b_spec,                                    # resident bias
            ],
            out_specs=pl.BlockSpec((TB, C_pad), lambda i: (i, 0)),
        ),
        compiler_params=pltpu.CompilerParams(
            dimension_semantics=("parallel",),
            vmem_limit_bytes=32 * 1024 * 1024),
        cost_estimate=pl.CostEstimate(
            flops=flops, transcendentals=0, bytes_accessed=bytes_accessed),
    )


_RESIDENT_SINGLE_BUFFER = None  # probed once; True/False after first call


# ---------------------------------------------------------------------------
# Forward wrapper: logits = x @ W.T + b   (W pre-packed by prepare_lr_params)
# ---------------------------------------------------------------------------
def lr_net_forward(x, wt_pad, b_pad, classes, *, out_dtype=None,
                   return_padded=False):
    """LR_NET forward.

    x:        (B, D) float32 (or already compute dtype)
    wt_pad:   (D, C_pad) from prepare_lr_params (compute dtype)
    b_pad:    (1, C_pad) float32 from prepare_lr_params
    classes:  real number of classes C (<= C_pad)
    out_dtype: logits dtype (default: x.dtype). bf16 halves writeback on v6e/v7x.
    return_padded: if True, return the full (B, C_pad) lane-dense logits and
      let the consumer slice/fuse (saves a second HBM pass over the logits).
    """
    global _RESIDENT_SINGLE_BUFFER

    B, D = x.shape
    C_pad = wt_pad.shape[1]
    out_dtype = x.dtype if out_dtype is None else out_dtype

    x_bytes = jnp.dtype(x.dtype).itemsize
    w_bytes = jnp.dtype(wt_pad.dtype).itemsize
    out_bytes = jnp.dtype(out_dtype).itemsize

    TB, B_pad = _pick_batch_tile(B, D, C_pad, x_bytes, out_bytes, w_bytes)

    # Pad ragged batch with zero rows (keeps the tiled, pipelined, megacore path).
    x_p = x if B_pad == B else jnp.pad(x, ((0, B_pad - B), (0, 0)))

    flops = 2 * B * D * classes                      # real work, not padded
    bytes_accessed = (x_p.size * x_bytes + wt_pad.size * w_bytes
                      + b_pad.size * 4 + B_pad * C_pad * out_bytes
                      + (0 if return_padded else
                         B_pad * C_pad * out_bytes + B * classes * out_bytes))

    if _RESIDENT_SINGLE_BUFFER is None:
        # One-time probe: prefer single-buffered resident W/bias, fall back to
        # default double-buffering if this Pallas build rejects Buffered(1).
        try:
            call = _build_call(B_pad, D, C_pad, TB, out_dtype,
                               flops, bytes_accessed, True)
            out_pad = jax.block_until_ready(call(x_p, wt_pad, b_pad))
            _RESIDENT_SINGLE_BUFFER = True
        except Exception:
            _RESIDENT_SINGLE_BUFFER = False
            call = _build_call(B_pad, D, C_pad, TB, out_dtype,
                               flops, bytes_accessed, False)
            out_pad = call(x_p, wt_pad, b_pad)
    else:
        call = _build_call(B_pad, D, C_pad, TB, out_dtype,
                           flops, bytes_accessed, _RESIDENT_SINGLE_BUFFER)
        out_pad = call(x_p, wt_pad, b_pad)

    if return_padded:
        return out_pad                       # (B_pad, C_pad) lane-dense logits
    return out_pad[:B, :classes]             # (B, C) — matches nn.Linear output


# ---------------------------------------------------------------------------
# JAX equivalent of the repo's norm_col_init
# ---------------------------------------------------------------------------
def norm_col_init(key, shape, std=1.0):
    x = jax.random.normal(key, shape, dtype=jnp.float32)
    return x * (std / jnp.sqrt(jnp.sum(x * x, axis=1, keepdims=True)))


if __name__ == "__main__":
    # Small shapes consistent with the module: PCA dim -> classes.
    BATCH, PCA_DIM, CLASSES = 8, 32, 16

    key = jax.random.PRNGKey(0)
    k_x, k_w = jax.random.split(key)

    x = jax.random.normal(k_x, (BATCH, PCA_DIM), dtype=jnp.float32)

    # fc1.weight: norm_col_init(.., 1.0); fc1.bias: zeros (as in __init__).
    weight = norm_col_init(k_w, (CLASSES, PCA_DIM), std=1.0)
    bias = jnp.zeros((CLASSES,), dtype=jnp.float32)

    # Static, one-time parameter repack (transpose + lane padding + dtype).
    wt_pad, b_pad, C = prepare_lr_params(weight, bias, compute_dtype=jnp.float32)

    out = lr_net_forward(x, wt_pad, b_pad, C)
    out = jax.block_until_ready(out)

    # Cross-check against plain JAX reference.
    ref = x @ weight.T + bias
    assert out.shape == (BATCH, CLASSES)
    assert jnp.allclose(out, ref, atol=1e-5, rtol=1e-5)

    # Also exercise a ragged batch (pads to a multiple of 8 internally).
    x_ragged = jax.random.normal(k_x, (BATCH + 3, PCA_DIM), dtype=jnp.float32)
    out_r = jax.block_until_ready(lr_net_forward(x_ragged, wt_pad, b_pad, C))
    ref_r = x_ragged @ weight.T + bias
    assert out_r.shape == (BATCH + 3, CLASSES)
    assert jnp.allclose(out_r, ref_r, atol=1e-5, rtol=1e-5)

    print("KERNEL_OK")
</pallas_src>

<mosaic_0001>
module attributes {stable_mosaic.version = 11 : i64} {
  func.func @linear_kernel(%arg0: i32, %arg1: memref<8x32xf32, #tpu.memory_space<vmem>>, %arg2: memref<32x128xf32, #tpu.memory_space<vmem>>, %arg3: memref<1x128xf32, #tpu.memory_space<vmem>>, %arg4: memref<8x128xf32, #tpu.memory_space<vmem>>) attributes {dimension_semantics = [#tpu.dimension_semantics<parallel>], iteration_bounds = array<i64: 1>, scalar_prefetch = 0 : i64, scratch_operands = 0 : i64, tpu.core_type = #tpu.core_type<tc>, window_params = [{transform_indices = @transform_0, window_bounds = array<i64: 8, 32>}, {pipeline_mode = #tpu.pipeline_mode<synchronous>, transform_indices = @transform_1, window_bounds = array<i64: 32, 128>}, {pipeline_mode = #tpu.pipeline_mode<synchronous>, transform_indices = @transform_2, window_bounds = array<i64: 1, 128>}, {transform_indices = @transform_3, window_bounds = array<i64: 8, 128>}]} {
    %c0 = arith.constant 0 : index
    %c0_0 = arith.constant 0 : index
    %0 = vector.load %arg1[%c0, %c0_0] : memref<8x32xf32, #tpu.memory_space<vmem>>, vector<8x32xf32>
    %c0_1 = arith.constant 0 : index
    %c0_2 = arith.constant 0 : index
    %1 = vector.load %arg2[%c0_1, %c0_2] : memref<32x128xf32, #tpu.memory_space<vmem>>, vector<32x128xf32>
    %cst = arith.constant dense<0.000000e+00> : vector<8x128xf32>
    %2 = tpu.matmul %0, %1, %cst {dimension_numbers = #tpu.dot_dimension_numbers<[1], [0], [0], [1], [0, 0, 1, 1], [], []>} : vector<8x32xf32>, vector<32x128xf32>, vector<8x128xf32> -> vector<8x128xf32>
    %c0_3 = arith.constant 0 : index
    %c0_4 = arith.constant 0 : index
    %3 = vector.load %arg3[%c0_3, %c0_4] : memref<1x128xf32, #tpu.memory_space<vmem>>, vector<1x128xf32>
    %4 = vector.broadcast %3 : vector<1x128xf32> to vector<8x128xf32>
    %5 = arith.addf %2, %4 : vector<8x128xf32>
    %c0_5 = arith.constant 0 : index
    %c0_6 = arith.constant 0 : index
    %6 = vector.load %arg4[%c0_5, %c0_6] : memref<8x128xf32, #tpu.memory_space<vmem>>, vector<8x128xf32>
    tpu.vector_store %arg4[%c0_5, %c0_6], %5 {strides = array<i32>} : memref<8x128xf32, #tpu.memory_space<vmem>>, vector<8x128xf32>,
    return
  }
  func.func @transform_0(%arg0: i32) -> (i32, i32) {
    %c0_i32 = arith.constant 0 : i32
    %c0_i32_0 = arith.constant 0 : i32
    return %arg0, %c0_i32 : i32, i32
  }
  func.func @transform_1(%arg0: i32) -> (i32, i32) {
    %c0_i32 = arith.constant 0 : i32
    %c0_i32_0 = arith.constant 0 : i32
    %c0_i32_1 = arith.constant 0 : i32
    return %c0_i32, %c0_i32_0 : i32, i32
  }
  func.func @transform_2(%arg0: i32) -> (i32, i32) {
    %c0_i32 = arith.constant 0 : i32
    %c0_i32_0 = arith.constant 0 : i32
    %c0_i32_1 = arith.constant 0 : i32
    return %c0_i32, %c0_i32_0 : i32, i32
  }
  func.func @transform_3(%arg0: i32) -> (i32, i32) {
    %c0_i32 = arith.constant 0 : i32
    %c0_i32_0 = arith.constant 0 : i32
    return %arg0, %c0_i32 : i32, i32
  }
}

module attributes {stable_mosaic.version = 11 : i64} {
  func.func @linear_kernel(%arg0: i32, %arg1: memref<8x32xf32, #tpu.memory_space<vmem>>, %arg2: memref<32x128xf32, #tpu.memory_space<vmem>>, %arg3: memref<1x128xf32, #tpu.memory_space<vmem>>, %arg4: memref<8x128xf32, #tpu.memory_space<vmem>>) attributes {dimension_semantics = [#tpu.dimension_semantics<parallel>], iteration_bounds = array<i64: 1>, scalar_prefetch = 0 : i64, scratch_operands = 0 : i64, tpu.core_type = #tpu.core_type<tc>, window_params = [{transform_indices = @transform_0, window_bounds = array<i64: 8, 32>}, {pipeline_mode = #tpu.pipeline_mode<synchronous>, transform_indices = @transform_1, window_bounds = array<i64: 32, 128>}, {pipeline_mode = #tpu.pipeline_mode<synchronous>, transform_indices = @transform_2, window_bounds = array<i64: 1, 128>}, {transform_indices = @transform_3, window_bounds = array<i64: 8, 128>}]} {
    %c0 = arith.constant 0 : index
    %c0_0 = arith.constant 0 : index
    %0 = vector.load %arg1[%c0, %c0_0] : memref<8x32xf32, #tpu.memory_space<vmem>>, vector<8x32xf32>
    %c0_1 = arith.constant 0 : index
    %c0_2 = arith.constant 0 : index
    %1 = vector.load %arg2[%c0_1, %c0_2] : memref<32x128xf32, #tpu.memory_space<vmem>>, vector<32x128xf32>
    %cst = arith.constant dense<0.000000e+00> : vector<8x128xf32>
    %2 = tpu.matmul %0, %1, %cst {dimension_numbers = #tpu.dot_dimension_numbers<[1], [0], [0], [1], [0, 0, 1, 1], [], []>} : vector<8x32xf32>, vector<32x128xf32>, vector<8x128xf32> -> vector<8x128xf32>
    %c0_3 = arith.constant 0 : index
    %c0_4 = arith.constant 0 : index
    %3 = vector.load %arg3[%c0_3, %c0_4] : memref<1x128xf32, #tpu.memory_space<vmem>>, vector<1x128xf32>
    %4 = vector.broadcast %3 : vector<1x128xf32> to vector<8x128xf32>
    %5 = arith.addf %2, %4 : vector<8x128xf32>
    %c0_5 = arith.constant 0 : index
    %c0_6 = arith.constant 0 : index
    %6 = vector.load %arg4[%c0_5, %c0_6] : memref<8x128xf32, #tpu.memory_space<vmem>>, vector<8x128xf32>
    tpu.vector_store %arg4[%c0_5, %c0_6], %5 {strides = array<i32>} : memref<8x128xf32, #tpu.memory_space<vmem>>, vector<8x128xf32>,
    return
  }
  func.func @transform_0(%arg0: i32) -> (i32, i32) {
    %c0_i32 = arith.constant 0 : i32
    %c0_i32_0 = arith.constant 0 : i32
    return %arg0, %c0_i32 : i32, i32
  }
  func.func @transform_1(%arg0: i32) -> (i32, i32) {
    %c0_i32 = arith.constant 0 : i32
    %c0_i32_0 = arith.constant 0 : i32
    %c0_i32_1 = arith.constant 0 : i32
    return %c0_i32, %c0_i32_0 : i32, i32
  }
  func.func @transform_2(%arg0: i32) -> (i32, i32) {
    %c0_i32 = arith.constant 0 : i32
    %c0_i32_0 = arith.constant 0 : i32
    %c0_i32_1 = arith.constant 0 : i32
    return %c0_i32, %c0_i32_0 : i32, i32
  }
  func.func @transform_3(%arg0: i32) -> (i32, i32) {
    %c0_i32 = arith.constant 0 : i32
    %c0_i32_0 = arith.constant 0 : i32
    return %arg0, %c0_i32 : i32, i32
  }
}

</mosaic_0001>

<llo_original>
// kernel: tpu_custom_call.1
$region0: #{tpu_custom_call.1}
  #allocation0 [shape = 'u32[]', space=smem, size = 0x4, offset = 0x4, fixed_abs, tag = 'smem constant byte address 0x4 - core index']
  #allocation1 [shape = 'u32[144,128]{1,0:T(1,128)}', space=vmem, size = 0x12000, scoped, tag = 'internal scratch']
  %s0 = inlined_call_operand.hbm [shape: f32[8,32], index: 0, kind: input, shape index: {}]
  %s1 = inlined_call_operand.hbm [shape: f32[32,128], index: 1, kind: input, shape index: {}]
  %s2 = inlined_call_operand.vmem [shape: f32[1,128], index: 2, kind: input, shape index: {}]
  %s3 = inlined_call_operand.hbm [shape: f32[8,128], index: 3, kind: output, shape index: {}]
  %s4 = sld [smem:[#allocation0]]
  $region30: #{tpu_custom_call.1} parent=0
    _
  %s6 = ssub.s32 1, %s4
  %s7 = scalar_select 0, %s6, %s4
  $region1: #{tpu_custom_call.1} parent=0
    #allocation2 [shape = 'u8[4096]{0}', space=vmem, size = 0x1000, scoped, tag = 'input window, operand 0, single buffered']
    #allocation3 [shape = 's32[1]{0}', space=sflag, size = 0x4, scoped, tag = 'scoped memory for tpu_custom_call.1']
    #allocation4 [shape = 's32[1]{0}', space=sflag, size = 0x4, scoped, tag = 'scoped memory for tpu_custom_call.1']
    #allocation5 [shape = 'u8[16384]{0}', space=vmem, size = 0x4000, scoped, tag = 'input window, operand 1, single buffered']
    #allocation6 [shape = 's32[1]{0}', space=sflag, size = 0x4, scoped, tag = 'scoped memory for tpu_custom_call.1']
    #allocation7 [shape = 'u8[4096]{0}', space=vmem, size = 0x1000, scoped, tag = 'output window, operand 0, single buffered']
    %8 = vsyncpa [#allocation3], 0
    %9 = vsyncpa [#allocation6], 0
    %10 = vsyncpa [#allocation4], 0
    // Predicated region
    $region2: #{tpu_custom_call.1} parent=1 // pred_check
      _
    $region3: #{tpu_custom_call.1} parent=1 // pred_check_branch
      %12 = sbr.rel (0) target = $region5
    $region4: #{tpu_custom_call.1} parent=1 // pred_region
      %s14 = ssub.s32 128, 128
      %15 = vsyncadd [#allocation3], %s14
      %s17 = sshll.u32 [#allocation2], 4
      %s18 = int_to_ptr.vmem [resolvable:$true] %s17
      %20 = dma.hbm_to_vmem [thread:$0]  %s0, 128, %s18, [#allocation3]
    $region5: #{tpu_custom_call.1} parent=1 // pred_fallthru
      _
    // Predicated region
    $region6: #{tpu_custom_call.1} parent=1 // pred_check
      _
    $region7: #{tpu_custom_call.1} parent=1 // pred_check_branch
      %22 = sbr.rel (0) target = $region9
    $region8: #{tpu_custom_call.1} parent=1 // pred_region
      %s24 = ssub.s32 512, 512
      %25 = vsyncadd [#allocation6], %s24
      %s26 = sshll.u32 [#allocation5], 4
      %s27 = int_to_ptr.vmem [resolvable:$true] %s26
      %32 = dma.hbm_to_vmem [thread:$0]  %s1, 512, %s27, [#allocation6], 128, 128, 8
    $region9: #{tpu_custom_call.1} parent=1 // pred_fallthru
      _
    // Predicated region
    $region10: #{tpu_custom_call.1} parent=1 // pred_check
      _
    $region11: #{tpu_custom_call.1} parent=1 // pred_check_branch
      %34 = sbr.rel (0) target = $region13
    $region12: #{tpu_custom_call.1} parent=1 // pred_region
      _
    $region13: #{tpu_custom_call.1} parent=1 // pred_fallthru
      _
    // Predicated region
    $region14: #{tpu_custom_call.1} parent=1 // pred_check
      _
    $region15: #{tpu_custom_call.1} parent=1 // pred_check_branch
      %36 = sbr.rel (0) target = $region17
    $region16: #{tpu_custom_call.1} parent=1 // pred_region
      %37 = dma.done [#allocation3], 128
    $region17: #{tpu_custom_call.1} parent=1 // pred_fallthru
      _
    // Predicated region
    $region18: #{tpu_custom_call.1} parent=1 // pred_check
      _
    $region19: #{tpu_custom_call.1} parent=1 // pred_check_branch
      %39 = sbr.rel (0) target = $region21
    $region20: #{tpu_custom_call.1} parent=1 // pred_region
      %40 = dma.done [#allocation6], 512
    $region21: #{tpu_custom_call.1} parent=1 // pred_fallthru
      _
    %v41 = vld [vmem:[#allocation2] sm:$0xff]
    %v42 = vld [vmem:[#allocation5] sm:$0xff]
    %v43 = vld [vmem:[#allocation5 + $0x8] sm:$0xff]
    %v44 = vld [vmem:[#allocation5 + $0x10] sm:$0xff]
    %v45 = vld [vmem:[#allocation5 + $0x18] sm:$0xff]
    %v46 = vld [vmem:[%s2] sm:$0x1]
    %v48 = vlaneseq
    %v49 = vshrl.u32 %v48, 7
    %v50 = vsub.s32 0, %v49
    %v51 = vrot.slane %v46, %v50
    %vm53 = vcmask 261120
    %v55 = vsel %vm53, %v41, 0
    %57 = vmatprep.subr.mxu0 0.0
    %58 = vmatpush1.msra.mxu0 %v42
    %59 = vmatprep.subr.mxu0 0.0
    %60 = vmatpush1.msra.mxu0 %v43
    %61 = vmatprep.subr.mxu0 0.0
    %62 = vmatpush1.msra.mxu0 %v44
    %63 = vmatprep.subr.mxu0 0.0
    %64 = vmatpush1.msra.mxu0 %v45
    %65 = vmatprep.subr.mxu0 0.0
    %66 = vmatpush1.msra.mxu0 0.0
    %67 = vmatprep.subr.mxu0 0.0
    %68 = vmatpush1.msra.mxu0 0.0
    %69 = vmatprep.subr.mxu0 0.0
    %70 = vmatpush1.msra.mxu0 0.0
    %71 = vmatprep.subr.mxu0 0.0
    %72 = vmatpush1.msra.mxu0 0.0
    %73 = vmatprep.subr.mxu0 0.0
    %74 = vmatpush1.msra.mxu0 0.0
    %75 = vmatprep.subr.mxu0 0.0
    %76 = vmatpush1.msra.mxu0 0.0
    %77 = vmatprep.subr.mxu0 0.0
    %78 = vmatpush1.msra.mxu0 0.0
    %79 = vmatprep.subr.mxu0 0.0
    %80 = vmatpush1.msra.mxu0 0.0
    %81 = vmatprep.subr.mxu0 0.0
    %82 = vmatpush1.msra.mxu0 0.0
    %83 = vmatprep.subr.mxu0 0.0
    %84 = vmatpush1.msra.mxu0 0.0
    %85 = vmatprep.subr.mxu0 0.0
    %86 = vmatpush1.msra.mxu0 0.0
    %87 = vmatprep.subr.mxu0 0.0
    %88 = vmatpush1.msra.mxu0 0.0
    %89 = vmatprep.subr.mxu0 0.0
    %90 = vmatpush1.msra.mxu0 0.0
    %91 = vmatprep.subr.mxu0 0.0
    %92 = vmatpush1.msra.mxu0 0.0
    %93 = vmatprep.subr.mxu0 0.0
    %94 = vmatpush1.msra.mxu0 0.0
    %95 = vmatprep.subr.mxu0 0.0
    %96 = vmatpush1.msra.mxu0 0.0
    %97 = vmatprep.subr.mxu0 0.0
    %98 = vmatpush1.msra.mxu0 0.0
    %99 = vmatprep.subr.mxu0 0.0
    %100 = vmatpush1.msra.mxu0 0.0
    %101 = vmatprep.subr.mxu0 0.0
    %102 = vmatpush1.msra.mxu0 0.0
    %103 = vmatprep.subr.mxu0 0.0
    %104 = vmatpush1.msra.mxu0 0.0
    %105 = vmatprep.subr.mxu0 0.0
    %106 = vmatpush1.msra.mxu0 0.0
    %107 = vmatprep.subr.mxu0 0.0
    %108 = vmatpush1.msra.mxu0 0.0
    %109 = vmatprep.subr.mxu0 0.0
    %110 = vmatpush1.msra.mxu0 0.0
    %111 = vmatprep.subr.mxu0 0.0
    %112 = vmatpush1.msra.mxu0 0.0
    %113 = vmatprep.subr.mxu0 0.0
    %114 = vmatpush1.msra.mxu0 0.0
    %115 = vmatprep.subr.mxu0 0.0
    %116 = vmatpush1.msra.mxu0 0.0
    %117 = vmatprep.subr.mxu0 0.0
    %118 = vmatpush1.msra.mxu0 0.0
    %119 = vmatprep.subr.mxu0 0.0
    %120 = vmatpush1.msra.mxu0 0.0
    %121 = vmatprep.mubr.f32.mxu0 0.0
    %122 = vmatmul.mubr.f32.gmra.mrb[0].mxu0 %v55
    %v123 = vpop.f32.mrb[0].mxu0
    %v124 = vadd.f32 %v51, %v123
    %v125 = vpop.f32.mrb[0].mxu0
    %126 = vdwg.mxu0
    %127 = vst [vmem:[#allocation7] sm:$0xff] %v124
    // Predicated region
    $region22: #{tpu_custom_call.1} parent=1 // pred_check
      _
    $region23: #{tpu_custom_call.1} parent=1 // pred_check_branch
      %129 = sbr.rel (0) target = $region25
    $region24: #{tpu_custom_call.1} parent=1 // pred_region
      %s131 = ssub.s32 128, 128
      %132 = vsyncadd [#allocation4], %s131
      %s134 = sshll.u32 [#allocation7], 4
      %s135 = int_to_ptr.vmem [resolvable:$true] %s134
      %137 = dma.vmem_to_hbm [thread:$0]  %s135, 128, %s3, [#allocation4]
    $region25: #{tpu_custom_call.1} parent=1 // pred_fallthru
      _
    // Predicated region
    $region26: #{tpu_custom_call.1} parent=1 // pred_check
      _
    $region27: #{tpu_custom_call.1} parent=1 // pred_check_branch
      %139 = sbr.rel (0) target = $region29
    $region28: #{tpu_custom_call.1} parent=1 // pred_region
      %140 = dma.done [#allocation4], 128
    $region29: #{tpu_custom_call.1} parent=1 // pred_fallthru
      _
    %141 = vsyncpa [#allocation3], 1
    %142 = vsyncpa [#allocation6], 1
    %143 = vsyncpa [#allocation4], 1

// kernel: tpu_custom_call.1
$region0: #{tpu_custom_call.1}
  #allocation0 [shape = 'u32[]', space=smem, size = 0x4, offset = 0x4, fixed_abs, tag = 'smem constant byte address 0x4 - core index']
  #allocation1 [shape = 'u32[144,128]{1,0:T(1,128)}', space=vmem, size = 0x12000, scoped, tag = 'internal scratch']
  %s0 = inlined_call_operand.hbm [shape: f32[8,32], index: 0, kind: input, shape index: {}]
  %s1 = inlined_call_operand.hbm [shape: f32[32,128], index: 1, kind: input, shape index: {}]
  %s2 = inlined_call_operand.vmem [shape: f32[1,128], index: 2, kind: input, shape index: {}]
  %s3 = inlined_call_operand.hbm [shape: f32[8,128], index: 3, kind: output, shape index: {}]
  %s4 = sld [smem:[#allocation0]]
  $region30: #{tpu_custom_call.1} parent=0
    _
  %s6 = ssub.s32 1, %s4
  %s7 = scalar_select 0, %s6, %s4
  $region1: #{tpu_custom_call.1} parent=0
    #allocation2 [shape = 'u8[4096]{0}', space=vmem, size = 0x1000, scoped, tag = 'input window, operand 0, single buffered']
    #allocation3 [shape = 's32[1]{0}', space=sflag, size = 0x4, scoped, tag = 'scoped memory for tpu_custom_call.1']
    #allocation4 [shape = 's32[1]{0}', space=sflag, size = 0x4, scoped, tag = 'scoped memory for tpu_custom_call.1']
    #allocation5 [shape = 'u8[16384]{0}', space=vmem, size = 0x4000, scoped, tag = 'input window, operand 1, single buffered']
    #allocation6 [shape = 's32[1]{0}', space=sflag, size = 0x4, scoped, tag = 'scoped memory for tpu_custom_call.1']
    #allocation7 [shape = 'u8[4096]{0}', space=vmem, size = 0x1000, scoped, tag = 'output window, operand 0, single buffered']
    %8 = vsyncpa [#allocation3], 0
    %9 = vsyncpa [#allocation6], 0
    %10 = vsyncpa [#allocation4], 0
    // Predicated region
    $region2: #{tpu_custom_call.1} parent=1 // pred_check
      _
    $region3: #{tpu_custom_call.1} parent=1 // pred_check_branch
      %12 = sbr.rel (0) target = $region5
    $region4: #{tpu_custom_call.1} parent=1 // pred_region
      %s14 = ssub.s32 128, 128
      %15 = vsyncadd [#allocation3], %s14
      %s17 = sshll.u32 [#allocation2], 4
      %s18 = int_to_ptr.vmem [resolvable:$true] %s17
      %20 = dma.hbm_to_vmem [thread:$0]  %s0, 128, %s18, [#allocation3]
    $region5: #{tpu_custom_call.1} parent=1 // pred_fallthru
      _
    // Predicated region
    $region6: #{tpu_custom_call.1} parent=1 // pred_check
      _
    $region7: #{tpu_custom_call.1} parent=1 // pred_check_branch
      %22 = sbr.rel (0) target = $region9
    $region8: #{tpu_custom_call.1} parent=1 // pred_region
      %s24 = ssub.s32 512, 512
      %25 = vsyncadd [#allocation6], %s24
      %s26 = sshll.u32 [#allocation5], 4
      %s27 = int_to_ptr.vmem [resolvable:$true] %s26
      %32 = dma.hbm_to_vmem [thread:$0]  %s1, 512, %s27, [#allocation6], 128, 128, 8
    $region9: #{tpu_custom_call.1} parent=1 // pred_fallthru
      _
    // Predicated region
    $region10: #{tpu_custom_call.1} parent=1 // pred_check
      _
    $region11: #{tpu_custom_call.1} parent=1 // pred_check_branch
      %34 = sbr.rel (0) target = $region13
    $region12: #{tpu_custom_call.1} parent=1 // pred_region
      _
    $region13: #{tpu_custom_call.1} parent=1 // pred_fallthru
      _
    // Predicated region
    $region14: #{tpu_custom_call.1} parent=1 // pred_check
      _
    $region15: #{tpu_custom_call.1} parent=1 // pred_check_branch
      %36 = sbr.rel (0) target = $region17
    $region16: #{tpu_custom_call.1} parent=1 // pred_region
      %37 = dma.done [#allocation3], 128
    $region17: #{tpu_custom_call.1} parent=1 // pred_fallthru
      _
    // Predicated region
    $region18: #{tpu_custom_call.1} parent=1 // pred_check
      _
    $region19: #{tpu_custom_call.1} parent=1 // pred_check_branch
      %39 = sbr.rel (0) target = $region21
    $region20: #{tpu_custom_call.1} parent=1 // pred_region
      %40 = dma.done [#allocation6], 512
    $region21: #{tpu_custom_call.1} parent=1 // pred_fallthru
      _
    %v41 = vld [vmem:[#allocation2] sm:$0xff]
    %v42 = vld [vmem:[#allocation5] sm:$0xff]
    %v43 = vld [vmem:[#allocation5 + $0x8] sm:$0xff]
    %v44 = vld [vmem:[#allocation5 + $0x10] sm:$0xff]
    %v45 = vld [vmem:[#allocation5 + $0x18] sm:$0xff]
    %v46 = vld [vmem:[%s2] sm:$0x1]
    %v48 = vlaneseq
    %v49 = vshrl.u32 %v48, 7
    %v50 = vsub.s32 0, %v49
    %v51 = vrot.slane %v46, %v50
    %vm53 = vcmask 261120
    %v55 = vsel %vm53, %v41, 0
    %57 = vmatprep.subr.mxu0 0.0
    %58 = vmatpush1.msra.mxu0 %v42
    %59 = vmatprep.subr.mxu0 0.0
    %60 = vmatpush1.msra.mxu0 %v43
    %61 = vmatprep.subr.mxu0 0.0
    %62 = vmatpush1.msra.mxu0 %v44
    %63 = vmatprep.subr.mxu0 0.0
    %64 = vmatpush1.msra.mxu0 %v45
    %65 = vmatprep.subr.mxu0 0.0
    %66 = vmatpush1.msra.mxu0 0.0
    %67 = vmatprep.subr.mxu0 0.0
    %68 = vmatpush1.msra.mxu0 0.0
    %69 = vmatprep.subr.mxu0 0.0
    %70 = vmatpush1.msra.mxu0 0.0
    %71 = vmatprep.subr.mxu0 0.0
    %72 = vmatpush1.msra.mxu0 0.0
    %73 = vmatprep.subr.mxu0 0.0
    %74 = vmatpush1.msra.mxu0 0.0
    %75 = vmatprep.subr.mxu0 0.0
    %76 = vmatpush1.msra.mxu0 0.0
    %77 = vmatprep.subr.mxu0 0.0
    %78 = vmatpush1.msra.mxu0 0.0
    %79 = vmatprep.subr.mxu0 0.0
    %80 = vmatpush1.msra.mxu0 0.0
    %81 = vmatprep.subr.mxu0 0.0
    %82 = vmatpush1.msra.mxu0 0.0
    %83 = vmatprep.subr.mxu0 0.0
    %84 = vmatpush1.msra.mxu0 0.0
    %85 = vmatprep.subr.mxu0 0.0
    %86 = vmatpush1.msra.mxu0 0.0
    %87 = vmatprep.subr.mxu0 0.0
    %88 = vmatpush1.msra.mxu0 0.0
    %89 = vmatprep.subr.mxu0 0.0
    %90 = vmatpush1.msra.mxu0 0.0
    %91 = vmatprep.subr.mxu0 0.0
    %92 = vmatpush1.msra.mxu0 0.0
    %93 = vmatprep.subr.mxu0 0.0
    %94 = vmatpush1.msra.mxu0 0.0
    %95 = vmatprep.subr.mxu0 0.0
    %96 = vmatpush1.msra.mxu0 0.0
    %97 = vmatprep.subr.mxu0 0.0
    %98 = vmatpush1.msra.mxu0 0.0
    %99 = vmatprep.subr.mxu0 0.0
    %100 = vmatpush1.msra.mxu0 0.0
    %101 = vmatprep.subr.mxu0 0.0
    %102 = vmatpush1.msra.mxu0 0.0
    %103 = vmatprep.subr.mxu0 0.0
    %104 = vmatpush1.msra.mxu0 0.0
    %105 = vmatprep.subr.mxu0 0.0
    %106 = vmatpush1.msra.mxu0 0.0
    %107 = vmatprep.subr.mxu0 0.0
    %108 = vmatpush1.msra.mxu0 0.0
    %109 = vmatprep.subr.mxu0 0.0
    %110 = vmatpush1.msra.mxu0 0.0
    %111 = vmatprep.subr.mxu0 0.0
    %112 = vmatpush1.msra.mxu0 0.0
    %113 = vmatprep.subr.mxu0 0.0
    %114 = vmatpush1.msra.mxu0 0.0
    %115 = vmatprep.subr.mxu0 0.0
    %116 = vmatpush1.msra.mxu0 0.0
    %117 = vmatprep.subr.mxu0 0.0
    %118 = vmatpush1.msra.mxu0 0.0
    %119 = vmatprep.subr.mxu0 0.0
    %120 = vmatpush1.msra.mxu0 0.0
    %121 = vmatprep.mubr.f32.mxu0 0.0
    %122 = vmatmul.mubr.f32.gmra.mrb[0].mxu0 %v55
    %v123 = vpop.f32.mrb[0].mxu0
    %v124 = vadd.f32 %v51, %v123
    %v125 = vpop.f32.mrb[0].mxu0
    %126 = vdwg.mxu0
    %127 = vst [vmem:[#allocation7] sm:$0xff] %v124
    // Predicated region
    $region22: #{tpu_custom_call.1} parent=1 // pred_check
      _
    $region23: #{tpu_custom_call.1} parent=1 // pred_check_branch
      %129 = sbr.rel (0) target = $region25
    $region24: #{tpu_custom_call.1} parent=1 // pred_region
      %s131 = ssub.s32 128, 128
      %132 = vsyncadd [#allocation4], %s131
      %s134 = sshll.u32 [#allocation7], 4
      %s135 = int_to_ptr.vmem [resolvable:$true] %s134
      %137 = dma.vmem_to_hbm [thread:$0]  %s135, 128, %s3, [#allocation4]
    $region25: #{tpu_custom_call.1} parent=1 // pred_fallthru
      _
    // Predicated region
    $region26: #{tpu_custom_call.1} parent=1 // pred_check
      _
    $region27: #{tpu_custom_call.1} parent=1 // pred_check_branch
      %139 = sbr.rel (0) target = $region29
    $region28: #{tpu_custom_call.1} parent=1 // pred_region
      %140 = dma.done [#allocation4], 128
    $region29: #{tpu_custom_call.1} parent=1 // pred_fallthru
      _
    %141 = vsyncpa [#allocation3], 1
    %142 = vsyncpa [#allocation6], 1
    %143 = vsyncpa [#allocation4], 1

</llo_original>
